<compile_context>
chip_gen: v7x
topology: tpu7x:2x2x1
jax: 0.10.0
libtpu: 0.0.40
codegen_flags: <defaults>
</compile_context>

<pallas_src>
import functools

import jax
import jax.numpy as jnp
from jax.experimental import pallas as pl
from jax.experimental.pallas import tpu as pltpu

LN_EPS = 1e-6  # timm VisionTransformer uses LayerNorm(eps=1e-6)


# ----------------------------- in-kernel math ------------------------------

def _gelu_tanh(x):
    # tanh-approximate GELU (tanh runs on the EUP slot); |err| vs exact erf
    # GELU <= ~3e-3, well inside the bf16-matmul noise floor.
    c = 0.7978845608028654  # sqrt(2/pi)
    return 0.5 * x * (1.0 + jnp.tanh(c * (x + 0.044715 * (x * x * x))))


def _layer_norm(x, g, b):
    mu = jnp.mean(x, axis=-1, keepdims=True)
    var = jnp.mean((x - mu) ** 2, axis=-1, keepdims=True)
    return (x - mu) * jax.lax.rsqrt(var + LN_EPS) * g + b


# ------------------------------- kernels ------------------------------------

def _linear_kernel(x_ref, w_ref, b_ref, o_ref):
    x = x_ref[0].astype(jnp.bfloat16)                     # (M, K) bf16
    o_ref[0] = (jnp.dot(x, w_ref[...], preferred_element_type=jnp.float32)
                + b_ref[...])


def _decoder_blocks_kernel(x_ref,
                           ln1_g, ln1_b, wqkv, bqkv, wo, bo,
                           ln2_g, ln2_b, w1, b1, w2, b2,
                           o_ref, x_scr, attn_scr, *, num_heads, n_valid):
    """One grid step = (batch tile bi, layer l).  Activations are carried in a
    VMEM scratch across the depth axis; per-layer weights are pipelined one
    layer ahead and amortized over the Bt batch elements in the tile."""
    layer = pl.program_id(1)

    @pl.when(layer == 0)
    def _():
        x_scr[...] = x_ref[...]                           # load tokens for bi

    x = x_scr[...]                                        # (Bt, N, D) f32
    Bt, N, D = x.shape
    hd = D // num_heads

    # ---- multi-head self-attention ----
    h = _layer_norm(x, ln1_g[0], ln1_b[0]).astype(jnp.bfloat16)
    qkv = (jnp.dot(h.reshape(Bt * N, D), wqkv[0],
                   preferred_element_type=jnp.float32) + bqkv[0])
    qkv = qkv.astype(jnp.bfloat16)                        # single cast
    # scale 1/sqrt(hd) was folded into the Q third of wqkv/bqkv at stack time
    q = qkv[:, 0 * D:1 * D].reshape(Bt, N, D)
    k = qkv[:, 1 * D:2 * D].reshape(Bt, N, D)
    v = qkv[:, 2 * D:3 * D].reshape(Bt, N, D)

    if n_valid < N:                                       # static pad-mask
        kmask = jax.lax.broadcasted_iota(jnp.int32, (1, 1, N), 2) >= n_valid

    for hh in range(num_heads):                           # static unroll
        sl = slice(hh * hd, (hh + 1) * hd)
        s = jnp.einsum('bqd,bkd->bqk', q[:, :, sl], k[:, :, sl],
                       preferred_element_type=jnp.float32)
        if n_valid < N:
            s = jnp.where(kmask, -1e30, s)
        s = s - jnp.max(s, axis=-1, keepdims=True)
        e = jnp.exp(s)
        p = e * pl.reciprocal(jnp.sum(e, axis=-1, keepdims=True), approx=True)
        oh = jnp.einsum('bqk,bkd->bqd', p.astype(jnp.bfloat16), v[:, :, sl],
                        preferred_element_type=jnp.float32)
        # write head output into its lane slice of the scratch buffer
        attn_scr[:, :, sl] = oh.astype(jnp.bfloat16)

    # ONE full-K output projection (replaces num_heads hd-wide dot_generals)
    proj = (jnp.dot(attn_scr[...].reshape(Bt * N, D), wo[0],
                    preferred_element_type=jnp.float32) + bo[0])
    x = x + proj.reshape(Bt, N, D)

    # ---- MLP ----
    h2 = _layer_norm(x, ln2_g[0], ln2_b[0]).astype(jnp.bfloat16)
    m = (jnp.dot(h2.reshape(Bt * N, D), w1[0],
                 preferred_element_type=jnp.float32) + b1[0])
    m = _gelu_tanh(m).astype(jnp.bfloat16)
    m = jnp.dot(m, w2[0], preferred_element_type=jnp.float32) + b2[0]
    x = x + m.reshape(Bt, N, D)

    x_scr[...] = x                                        # carry to next layer

    @pl.when(layer == pl.num_programs(1) - 1)
    def _():
        o_ref[...] = x.astype(o_ref.dtype)                # bf16 HBM boundary


def _norm_head_kernel(x_ref, g_ref, b_ref, w_ref, bh_ref, o_ref):
    x = x_ref[0].astype(jnp.float32)                      # bf16 -> f32 stats
    h = _layer_norm(x, g_ref[...], b_ref[...]).astype(jnp.bfloat16)
    o_ref[0] = (jnp.dot(h, w_ref[...], preferred_element_type=jnp.float32)
                + bh_ref[...])


# ------------------------------- wrappers ------------------------------------

def _row_tile(n):
    for t in (512, 256, 128):
        if n % t == 0:
            return t
    return n


def _layer_spec(shape):
    """Block = one layer's slice of a (depth, ...) stacked parameter."""
    block = (1,) + tuple(shape[1:])
    zeros = (0,) * (len(shape) - 1)
    return pl.BlockSpec(block, lambda bi, l, zeros=zeros: (l,) + zeros)


def _decoder_layer_weight_bytes(D, hidden):
    w = 2 * (3 * D * D + D * D + D * hidden + hidden * D)      # bf16 matmul w
    b = 4 * (3 * D + D + hidden + D + 4 * D)                   # f32 biases/LN
    return w + b


def _pick_batch_tile(B, N, D, hidden, budget=48 << 20):
    """Largest Bt in {8,4,2,1} dividing B whose VMEM footprint fits budget."""
    w2 = 2 * _decoder_layer_weight_bytes(D, hidden)            # double-buffer
    for bt in (8, 4, 2, 1):
        if B % bt:
            continue
        carry = bt * N * D * 4                                 # f32 scratch
        attn = bt * N * D * 2                                  # bf16 scratch
        io = 2 * (bt * N * D * 4 + bt * N * D * 2)             # in/out bufs
        live = 2 * bt * N * max(3 * D, hidden) * 4             # intermediates
        if w2 + carry + attn + io + live <= budget:
            return bt
    return 1


def pallas_linear(x, w, b):
    B, M, K = x.shape
    N = w.shape[1]
    tm = _row_tile(M)
    return pl.pallas_call(
        _linear_kernel,
        out_shape=jax.ShapeDtypeStruct((B, M, N), jnp.float32),
        grid=(B, M // tm),
        in_specs=[pl.BlockSpec((1, tm, K), lambda b, t: (b, t, 0)),
                  pl.BlockSpec(w.shape, lambda b, t: (0, 0)),
                  pl.BlockSpec(b.shape, lambda b, t: (0, 0))],
        out_specs=pl.BlockSpec((1, tm, N), lambda b, t: (b, t, 0)),
        compiler_params=pltpu.CompilerParams(
            dimension_semantics=("parallel", "parallel")),
    )(x, w.astype(jnp.bfloat16), b)


_STACK_KEYS = ("ln1_g", "ln1_b", "wqkv", "bqkv", "wo", "bo",
               "ln2_g", "ln2_b", "w1", "b1", "w2", "b2")
_BF16_MATMUL_KEYS = ("wqkv", "wo", "w1", "w2")


def _stack_blocks(blocks, num_heads):
    """Stack per-layer params along a leading depth axis; fuse QKV and fold
    the attention scale into the Q third of the fused weight/bias."""
    D = blocks[0]["wq"].shape[0]
    hd = D // num_heads
    scale = float(hd) ** -0.5
    per_layer = []
    for blk in blocks:
        per_layer.append({
            "ln1_g": blk["ln1_g"], "ln1_b": blk["ln1_b"],
            "wqkv": jnp.concatenate(
                [blk["wq"] * scale, blk["wk"], blk["wv"]], axis=1),
            "bqkv": jnp.concatenate(
                [blk["bq"] * scale, blk["bk"], blk["bv"]], axis=1),
            "wo": blk["wo"], "bo": blk["bo"],
            "ln2_g": blk["ln2_g"], "ln2_b": blk["ln2_b"],
            "w1": blk["w1"], "b1": blk["b1"],
            "w2": blk["w2"], "b2": blk["b2"],
        })
    stacked = {}
    for key in _STACK_KEYS:
        s = jnp.stack([layer[key] for layer in per_layer], axis=0)
        if key in _BF16_MATMUL_KEYS:
            s = s.astype(jnp.bfloat16)
        stacked[key] = s
    return stacked


def pallas_decoder_blocks(x, blocks, num_heads, n_valid):
    B, N, D = x.shape
    depth = len(blocks)
    hidden = blocks[0]["w1"].shape[1]
    stacked = _stack_blocks(blocks, num_heads)
    args = [stacked[k] for k in _STACK_KEYS]

    Bt = _pick_batch_tile(B, N, D, hidden)

    flops = B * depth * (2 * N * D * (3 * D)              # fused QKV proj
                         + 2 * N * N * D * 2              # scores + PV
                         + 2 * N * D * D                  # output projection
                         + 2 * N * D * hidden * 2)        # MLP
    transc = B * depth * (num_heads * N * N + N * hidden + 2 * N)
    wbytes = sum(int(a.size) * a.dtype.itemsize for a in args)
    bytes_accessed = int((B // Bt) * wbytes + B * N * D * (4 + 2))

    return pl.pallas_call(
        functools.partial(_decoder_blocks_kernel, num_heads=num_heads,
                          n_valid=n_valid),
        out_shape=jax.ShapeDtypeStruct((B, N, D), jnp.bfloat16),
        grid=(B // Bt, depth),
        in_specs=[pl.BlockSpec((Bt, N, D), lambda bi, l: (bi, 0, 0))]
                 + [_layer_spec(a.shape) for a in args],
        out_specs=pl.BlockSpec((Bt, N, D), lambda bi, l: (bi, 0, 0)),
        scratch_shapes=[pltpu.VMEM((Bt, N, D), jnp.float32),    # residual carry
                        pltpu.VMEM((Bt, N, D), jnp.bfloat16)],  # head outputs
        compiler_params=pltpu.CompilerParams(
            dimension_semantics=("parallel", "arbitrary"),
            vmem_limit_bytes=64 * 1024 * 1024),
        cost_estimate=pl.CostEstimate(flops=int(flops), transcendentals=int(transc),
                                      bytes_accessed=bytes_accessed),
    )(x, *args)


def pallas_norm_head(x, g, b, w, bh):
    B, N, D = x.shape
    P = w.shape[1]
    P_pad = ((P + 127) // 128) * 128          # lane-dense output stores
    if P_pad != P:
        w = jnp.pad(w, ((0, 0), (0, P_pad - P)))
        bh = jnp.pad(bh, ((0, 0), (0, P_pad - P)))
    tn = _row_tile(N)
    out = pl.pallas_call(
        _norm_head_kernel,
        out_shape=jax.ShapeDtypeStruct((B, N, P_pad), jnp.float32),
        grid=(B, N // tn),
        in_specs=[pl.BlockSpec((1, tn, D), lambda b, t: (b, t, 0)),
                  pl.BlockSpec(g.shape, lambda b, t: (0, 0)),
                  pl.BlockSpec(b.shape, lambda b, t: (0, 0)),
                  pl.BlockSpec(w.shape, lambda b, t: (0, 0)),
                  pl.BlockSpec(bh.shape, lambda b, t: (0, 0))],
        out_specs=pl.BlockSpec((1, tn, P_pad), lambda b, t: (b, t, 0)),
        compiler_params=pltpu.CompilerParams(
            dimension_semantics=("parallel", "parallel")),
    )(x, g, b, w.astype(jnp.bfloat16), bh)
    return out[:, :, :P] if P_pad != P else out


def mae_decoder_forward(encoded, visible_idx, masked_idx, params, *,
                        num_heads, num_total):
    B = encoded.shape[0]
    D = params["proj_w"].shape[1]
    # proj (Pallas matmul)
    proj = pallas_linear(encoded, params["proj_w"], params["proj_b"])
    # build full token sequence (plain-JAX index scatter, matches scatter_)
    # TODO(synk): the batched scatter itself stays as XLA glue; a
    # scalar-prefetch gather kernel is possible but unnecessary here.
    full = jnp.zeros((B, num_total, D), jnp.float32)
    bidx = jnp.arange(B)[:, None]
    full = full.at[bidx, visible_idx].set(proj)
    mask_tok = jnp.broadcast_to(params["mask_token"],
                                (B, masked_idx.shape[1], D))
    full = full.at[bidx, masked_idx].set(mask_tok)
    # pad token axis to a multiple of 8 (sublane alignment); padded key
    # positions are masked out of the softmax inside the kernel.
    n_pad = ((num_total + 7) // 8) * 8
    if n_pad != num_total:
        full = jnp.pad(full, ((0, 0), (0, n_pad - num_total), (0, 0)))
    # all decoder transformer blocks in one fused, pipelined Pallas call
    x = pallas_decoder_blocks(full, params["blocks"], num_heads,
                              n_valid=num_total)
    # final norm + reconstruction head (Pallas, lane-padded output)
    out = pallas_norm_head(x, params["norm_g"], params["norm_b"],
                           params["head_w"], params["head_b"])
    return out[:, :num_total, :]


# ----------------------------- params & reference ---------------------------

def init_params(key, embed_dim, dec_dim, depth, patch_size):
    hidden = int(dec_dim * 4.0)
    patch_out = patch_size * patch_size * 3
    keys = iter(jax.random.split(key, 7 + depth * 16))

    def rnd(shape, scale=0.02):
        return (scale * jax.random.normal(next(keys), shape)).astype(jnp.float32)

    params = {
        "proj_w": rnd((embed_dim, dec_dim)), "proj_b": rnd((1, dec_dim)),
        "mask_token": rnd((1, 1, dec_dim)),
        "norm_g": 1.0 + rnd((1, dec_dim)), "norm_b": rnd((1, dec_dim)),
        "head_w": rnd((dec_dim, patch_out)), "head_b": rnd((1, patch_out)),
        "blocks": [],
    }
    for _ in range(depth):
        params["blocks"].append({
            "ln1_g": 1.0 + rnd((1, dec_dim)), "ln1_b": rnd((1, dec_dim)),
            "wq": rnd((dec_dim, dec_dim)), "bq": rnd((1, dec_dim)),
            "wk": rnd((dec_dim, dec_dim)), "bk": rnd((1, dec_dim)),
            "wv": rnd((dec_dim, dec_dim)), "bv": rnd((1, dec_dim)),
            "wo": rnd((dec_dim, dec_dim)), "bo": rnd((1, dec_dim)),
            "ln2_g": 1.0 + rnd((1, dec_dim)), "ln2_b": rnd((1, dec_dim)),
            "w1": rnd((dec_dim, hidden)), "b1": rnd((1, hidden)),
            "w2": rnd((hidden, dec_dim)), "b2": rnd((1, dec_dim)),
        })
    return params


def reference_forward(encoded, visible_idx, masked_idx, params, *,
                      num_heads, num_total):
    B = encoded.shape[0]
    D = params["proj_w"].shape[1]
    hd = D // num_heads

    def ln(x, g, b):
        mu = x.mean(-1, keepdims=True)
        var = ((x - mu) ** 2).mean(-1, keepdims=True)
        return (x - mu) / jnp.sqrt(var + LN_EPS) * g + b

    proj = encoded @ params["proj_w"] + params["proj_b"][0]
    full = jnp.zeros((B, num_total, D), jnp.float32)
    bidx = jnp.arange(B)[:, None]
    full = full.at[bidx, visible_idx].set(proj)
    full = full.at[bidx, masked_idx].set(
        jnp.broadcast_to(params["mask_token"], (B, masked_idx.shape[1], D)))
    x = full
    for blk in params["blocks"]:
        h = ln(x, blk["ln1_g"][0], blk["ln1_b"][0])
        q = (h @ blk["wq"] + blk["bq"][0]).reshape(B, -1, num_heads, hd)
        k = (h @ blk["wk"] + blk["bk"][0]).reshape(B, -1, num_heads, hd)
        v = (h @ blk["wv"] + blk["bv"][0]).reshape(B, -1, num_heads, hd)
        q, k, v = (t.transpose(0, 2, 1, 3) for t in (q, k, v))
        s = jnp.einsum("bhqd,bhkd->bhqk", q, k) * (hd ** -0.5)
        p = jax.nn.softmax(s, axis=-1)
        o = jnp.einsum("bhqk,bhkd->bhqd", p, v)
        o = o.transpose(0, 2, 1, 3).reshape(B, -1, D)
        x = x + o @ blk["wo"] + blk["bo"][0]
        h2 = ln(x, blk["ln2_g"][0], blk["ln2_b"][0])
        m = jax.nn.gelu(h2 @ blk["w1"] + blk["b1"][0], approximate=False)
        x = x + m @ blk["w2"] + blk["b2"][0]
    x = ln(x, params["norm_g"][0], params["norm_b"][0])
    return x @ params["head_w"] + params["head_b"][0]


# --------------------------------- main --------------------------------------

if __name__ == "__main__":
    # small config consistent with the module: embed_dim, decoder_embed_dim,
    # depth, num_heads, patch_size, img_size
    embed_dim, dec_dim = 32, 32
    depth, num_heads = 2, 4
    patch_size, img_size = 4, 16
    num_total = (img_size // patch_size) ** 2          # 16 patches
    B, num_visible = 2, 8
    num_masked = num_total - num_visible

    key = jax.random.PRNGKey(0)
    k_feat, k_perm, k_param = jax.random.split(key, 3)

    params = init_params(k_param, embed_dim, dec_dim, depth, patch_size)
    perms = jnp.stack([jax.random.permutation(k, num_total)
                       for k in jax.random.split(k_perm, B)]).astype(jnp.int32)
    visible_idx = perms[:, :num_visible]                # (B, num_visible)
    masked_idx = perms[:, num_visible:]                 # (B, num_masked)
    encoded = jax.random.normal(k_feat, (B, num_visible, embed_dim),
                                jnp.float32)

    out = mae_decoder_forward(encoded, visible_idx, masked_idx, params,
                              num_heads=num_heads, num_total=num_total)
    out = jax.block_until_ready(out)
    assert out.shape == (B, num_total, patch_size * patch_size * 3), out.shape

    ref = reference_forward(encoded, visible_idx, masked_idx, params,
                            num_heads=num_heads, num_total=num_total)
    # bf16 matmuls + bf16 HBM boundary + approx reciprocal + tanh GELU
    # => a few 1e-3 abs error
    assert jnp.allclose(out, ref, atol=2e-2, rtol=2e-2), (
        float(jnp.max(jnp.abs(out - ref))))

    print("KERNEL_OK")
</pallas_src>

<mosaic_0001>
module attributes {stable_mosaic.version = 11 : i64} {
  func.func @_linear_kernel(%arg0: i32, %arg1: i32, %arg2: memref<1x8x32xf32, #tpu.memory_space<vmem>>, %arg3: memref<32x32xbf16, #tpu.memory_space<vmem>>, %arg4: memref<1x32xf32, #tpu.memory_space<vmem>>, %arg5: memref<1x8x32xf32, #tpu.memory_space<vmem>>) attributes {dimension_semantics = [#tpu.dimension_semantics<parallel>, #tpu.dimension_semantics<parallel>], iteration_bounds = array<i64: 2, 1>, scalar_prefetch = 0 : i64, scratch_operands = 0 : i64, tpu.core_type = #tpu.core_type<tc>, window_params = [{transform_indices = @transform_0, window_bounds = array<i64: 1, 8, 32>}, {pipeline_mode = #tpu.pipeline_mode<synchronous>, transform_indices = @transform_1, window_bounds = array<i64: 32, 32>}, {pipeline_mode = #tpu.pipeline_mode<synchronous>, transform_indices = @transform_2, window_bounds = array<i64: 1, 32>}, {transform_indices = @transform_3, window_bounds = array<i64: 1, 8, 32>}]} {
    %c0 = arith.constant 0 : index
    %c0_0 = arith.constant 0 : index
    %c0_1 = arith.constant 0 : index
    %0 = vector.load %arg2[%c0, %c0_0, %c0_1] : memref<1x8x32xf32, #tpu.memory_space<vmem>>, vector<1x8x32xf32>
    %1 = vector.shape_cast %0 : vector<1x8x32xf32> to vector<8x32xf32>
    %2 = arith.truncf %1 : vector<8x32xf32> to vector<8x32xbf16>
    %c0_2 = arith.constant 0 : index
    %c0_3 = arith.constant 0 : index
    %3 = vector.load %arg3[%c0_2, %c0_3] : memref<32x32xbf16, #tpu.memory_space<vmem>>, vector<32x32xbf16>
    %cst = arith.constant dense<0.000000e+00> : vector<8x32xf32>
    %4 = tpu.matmul %2, %3, %cst {dimension_numbers = #tpu.dot_dimension_numbers<[1], [0], [0], [1], [0, 0, 1, 1], [], []>} : vector<8x32xbf16>, vector<32x32xbf16>, vector<8x32xf32> -> vector<8x32xf32>
    %c0_4 = arith.constant 0 : index
    %c0_5 = arith.constant 0 : index
    %5 = vector.load %arg4[%c0_4, %c0_5] : memref<1x32xf32, #tpu.memory_space<vmem>>, vector<1x32xf32>
    %6 = vector.broadcast %5 : vector<1x32xf32> to vector<8x32xf32>
    %7 = arith.addf %4, %6 : vector<8x32xf32>
    %c0_6 = arith.constant 0 : index
    %c0_7 = arith.constant 0 : index
    %c0_8 = arith.constant 0 : index
    %8 = vector.load %arg5[%c0_6, %c0_7, %c0_8] : memref<1x8x32xf32, #tpu.memory_space<vmem>>, vector<1x8x32xf32>
    %9 = vector.shape_cast %8 : vector<1x8x32xf32> to vector<8x32xf32>
    %10 = vector.shape_cast %7 : vector<8x32xf32> to vector<1x8x32xf32>
    tpu.vector_store %arg5[%c0_6, %c0_7, %c0_8], %10 {strides = array<i32>} : memref<1x8x32xf32, #tpu.memory_space<vmem>>, vector<1x8x32xf32>,
    return
  }
  func.func @transform_0(%arg0: i32, %arg1: i32) -> (i32, i32, i32) {
    %c0_i32 = arith.constant 0 : i32
    %c0_i32_0 = arith.constant 0 : i32
    return %arg0, %arg1, %c0_i32 : i32, i32, i32
  }
  func.func @transform_1(%arg0: i32, %arg1: i32) -> (i32, i32) {
    %c0_i32 = arith.constant 0 : i32
    %c0_i32_0 = arith.constant 0 : i32
    %c0_i32_1 = arith.constant 0 : i32
    return %c0_i32, %c0_i32_0 : i32, i32
  }
  func.func @transform_2(%arg0: i32, %arg1: i32) -> (i32, i32) {
    %c0_i32 = arith.constant 0 : i32
    %c0_i32_0 = arith.constant 0 : i32
    %c0_i32_1 = arith.constant 0 : i32
    return %c0_i32, %c0_i32_0 : i32, i32
  }
  func.func @transform_3(%arg0: i32, %arg1: i32) -> (i32, i32, i32) {
    %c0_i32 = arith.constant 0 : i32
    %c0_i32_0 = arith.constant 0 : i32
    return %arg0, %arg1, %c0_i32 : i32, i32, i32
  }
}

</mosaic_0001>

<llo_original>
// kernel: tpu_custom_call.1
$region0: #{tpu_custom_call.1}
  #allocation0 [shape = 'u32[]', space=smem, size = 0x4, offset = 0x4, fixed_abs, tag = 'smem constant byte address 0x4 - core index']
  #allocation1 [shape = 'u32[144,128]{1,0:T(1,128)}', space=vmem, size = 0x12000, scoped, tag = 'internal scratch']
  %s0 = inlined_call_operand.hbm [shape: f32[2,8,32], index: 0, kind: input, shape index: {}]
  %s1 = inlined_call_operand.hbm [shape: bf16[32,32], index: 1, kind: input, shape index: {}]
  %s2 = inlined_call_operand.vmem [shape: f32[1,32], index: 2, kind: input, shape index: {}]
  %s3 = inlined_call_operand.hbm [shape: f32[2,8,32], index: 3, kind: output, shape index: {}]
  %s4 = sld [smem:[#allocation0]]
  $region53: #{tpu_custom_call.1} parent=0
    _
  %s6 = ssub.s32 1, %s4
  %s7 = scalar_select 0, %s6, %s4
  $region1: #{tpu_custom_call.1} parent=0
    #allocation2 [shape = 'u8[8192]{0}', space=vmem, size = 0x2000, scoped, tag = 'input window, operand 0']
    #allocation3 [shape = 's32[2]{0}', space=sflag, size = 0x8, scoped, tag = 'scoped memory for tpu_custom_call.1']
    #allocation4 [shape = 's32[2]{0}', space=sflag, size = 0x8, scoped, tag = 'scoped memory for tpu_custom_call.1']
    #allocation5 [shape = 'u8[8192]{0}', space=vmem, size = 0x2000, scoped, tag = 'input window, operand 1, single buffered']
    #allocation6 [shape = 's32[1]{0}', space=sflag, size = 0x4, scoped, tag = 'scoped memory for tpu_custom_call.1']
    #allocation7 [shape = 'u8[8192]{0}', space=vmem, size = 0x2000, scoped, tag = 'output window, operand 0']
    %8 = vsyncpa [#allocation3], 0
    %s9 = scalar_lea.sflag [#allocation3], 1
    %10 = vsyncpa %s9, 0
    %11 = vsyncpa [#allocation6], 0
    %12 = vsyncpa [#allocation4], 0
    %s13 = scalar_lea.sflag [#allocation4], 1
    %14 = vsyncpa %s13, 0
    loop: start=0, step=1, limit=4
    $region2: #{tpu_custom_call.1} parent=1 // loop_pre_header
      _
    $region3: #{tpu_custom_call.1} parent=1 // loop_header
      %s16 = sphi 0, %s20
      %p17 = scmp.ge.s32.totalorder %s16, 4
      %s23 = sphi 0, %s35
      %s24 = sphi 0, %s31
      %s25 = sphi 0, %s23
      %s26 = sphi 0, %s24
      %s27 = sphi 0, %s25
      %s28 = sphi 0, %s26
      %s40 = sphi 0, %s42
      %s43 = sphi 0, %s40
      %s44 = sphi 0, %s43
      %s60 = sphi 0, %s44
      %s64 = sphi 0, %s64
      %s66 = sphi 0, %s64
      %s67 = sphi 0, %s66
      %s81 = sphi 0, %s67
      %s85 = sphi 0, %s85
      %s87 = sphi 0, %s85
      %s88 = sphi 0, %s87
      %s102 = sphi 0, %s88
      %s110 = sphi 0, %s112
      %s113 = sphi 0, %s110
      %s114 = sphi 0, %s113
      %s130 = sphi 0, %s114
    $region4: #{tpu_custom_call.1} parent=1 // loop_header_branch
      %19 = sbr.rel (%p17) target = $region8
    $region5: #{tpu_custom_call.1} parent=1 // loop_body
      %s21 = ssub.s32 %s16, 1
      %s22 = ssub.s32 %s16, 2
      %s29 = sadd.s32 1, %s24
      %p30 = scmp.ge.s32.totalorder %s29, 1
      %s31 = scalar_select %p30, 0, %s29
      %s32 = sadd.s32 1, %s23
      %s33 = scalar_select %p30, %s32, %s23
      %p34 = scmp.ge.s32.totalorder %s33, 2
      %s35 = scalar_select %p34, 0, %s33
      %s36 = ssub.s32 %s23, %s35
      %s37 = ssub.s32 %s24, %s31
      %s38 = sor.u32 %s36, %s37
      %p39 = scmp.eq.s32.totalorder %s38, 0
      %s41 = sadd.s32 %s40, 1
      %s42 = scalar_select %p39, %s40, %s41
      %p45 = pneg %p39
      %p46 = scmp.eq.s32.totalorder %s16, 1
      %p47 = por %p45, %p46
      %p48 = scmp.ne.s32.totalorder %s40, %s43
      %p49 = scmp.eq.s32.totalorder %s16, 0
      %p50 = por %p48, %p49
      %p51 = scmp.ne.s32.totalorder %s40, %s43
      %p52 = scmp.eq.s32.totalorder %s21, 1
      %p53 = por %p51, %p52
      %p54 = scmp.ne.s32.totalorder %s43, %s44
      %p55 = scmp.eq.s32.totalorder %s21, 0
      %p56 = por %p54, %p55
      %p57 = scmp.ne.s32.totalorder %s43, %s44
      %p58 = scmp.eq.s32.totalorder %s22, 1
      %p59 = por %p57, %p58
      %p61 = scmp.ne.s32.totalorder %s44, %s60
      %p62 = scmp.eq.s32.totalorder %s22, 0
      %p63 = por %p61, %p62
      %s65 = sadd.s32 %s64, 1
      %p68 = scmp.eq.s32.totalorder %s16, 1
      %p69 = scmp.ne.s32.totalorder %s64, %s66
      %p70 = scmp.eq.s32.totalorder %s16, 0
      %p71 = por %p69, %p70
      %p72 = scmp.ne.s32.totalorder %s64, %s66
      %p73 = scmp.eq.s32.totalorder %s21, 1
      %p74 = por %p72, %p73
      %p75 = scmp.ne.s32.totalorder %s66, %s67
      %p76 = scmp.eq.s32.totalorder %s21, 0
      %p77 = por %p75, %p76
      %p78 = scmp.ne.s32.totalorder %s66, %s67
      %p79 = scmp.eq.s32.totalorder %s22, 1
      %p80 = por %p78, %p79
      %p82 = scmp.ne.s32.totalorder %s67, %s81
      %p83 = scmp.eq.s32.totalorder %s22, 0
      %p84 = por %p82, %p83
      %s86 = sadd.s32 %s85, 1
      %p89 = scmp.eq.s32.totalorder %s16, 1
      %p90 = scmp.ne.s32.totalorder %s85, %s87
      %p91 = scmp.eq.s32.totalorder %s16, 0
      %p92 = por %p90, %p91
      %p93 = scmp.ne.s32.totalorder %s85, %s87
      %p94 = scmp.eq.s32.totalorder %s21, 1
      %p95 = por %p93, %p94
      %p96 = scmp.ne.s32.totalorder %s87, %s88
      %p97 = scmp.eq.s32.totalorder %s21, 0
      %p98 = por %p96, %p97
      %p99 = scmp.ne.s32.totalorder %s87, %s88
      %p100 = scmp.eq.s32.totalorder %s22, 1
      %p101 = por %p99, %p100
      %p103 = scmp.ne.s32.totalorder %s88, %s102
      %p104 = scmp.eq.s32.totalorder %s22, 0
      %p105 = por %p103, %p104
      %s106 = ssub.s32 %s23, %s35
      %s107 = ssub.s32 %s24, %s31
      %s108 = sor.u32 %s106, %s107
      %p109 = scmp.eq.s32.totalorder %s108, 0
      %s111 = sadd.s32 %s110, 1
      %s112 = scalar_select %p109, %s110, %s111
      %p115 = pneg %p109
      %p116 = scmp.eq.s32.totalorder %s16, 1
      %p117 = por %p115, %p116
      %p118 = scmp.ne.s32.totalorder %s110, %s113
      %p119 = scmp.eq.s32.totalorder %s16, 0
      %p120 = por %p118, %p119
      %p121 = scmp.ne.s32.totalorder %s110, %s113
      %p122 = scmp.eq.s32.totalorder %s21, 1
      %p123 = por %p121, %p122
      %p124 = scmp.ne.s32.totalorder %s113, %s114
      %p125 = scmp.eq.s32.totalorder %s21, 0
      %p126 = por %p124, %p125
      %p127 = scmp.ne.s32.totalorder %s113, %s114
      %p128 = scmp.eq.s32.totalorder %s22, 1
      %p129 = por %p127, %p128
      %p131 = scmp.ne.s32.totalorder %s114, %s130
      %p132 = scmp.eq.s32.totalorder %s22, 0
      %p133 = por %p131, %p132
      %p134 = scmp.le.s32.totalorder 1, %s16
      %p135 = scmp.lt.s32.totalorder %s16, 3
      %p136 = pnand %p134, %p135
      %p137 = pneg %p136
      // Predicated region
      $region9: #{tpu_custom_call.1} parent=5 // pred_check
        _
      $region10: #{tpu_custom_call.1} parent=5 // pred_check_branch
        %139 = sbr.rel (%p136) target = $region12
      $region11: #{tpu_custom_call.1} parent=5 // pred_region
        %s140 = ssub.s32 %s16, 1
        // Predicated region
        $region13: #{tpu_custom_call.1} parent=11 // pred_check
          %p141 = pneg %p77
        $region14: #{tpu_custom_call.1} parent=11 // pred_check_branch
          %143 = sbr.rel (%p141) target = $region16
        $region15: #{tpu_custom_call.1} parent=11 // pred_region
          %s145 = ssub.s32 256, 256
          %146 = vsyncadd [#allocation6], %s145
          %s147 = sshll.u32 [#allocation5], 4
          %s148 = int_to_ptr.vmem [resolvable:$true] %s147
          %153 = dma.hbm_to_vmem [thread:$0]  %s1, 256, %s148, [#allocation6], 64, 64, 4
        $region16: #{tpu_custom_call.1} parent=11 // pred_fallthru
          _
        // Predicated region
        $region17: #{tpu_custom_call.1} parent=11 // pred_check
          %p154 = pneg %p98
        $region18: #{tpu_custom_call.1} parent=11 // pred_check_branch
          %156 = sbr.rel (%p154) target = $region20
        $region19: #{tpu_custom_call.1} parent=11 // pred_region
          _
        $region20: #{tpu_custom_call.1} parent=11 // pred_fallthru
          _
      $region12: #{tpu_custom_call.1} parent=5 // pred_fallthru
        _
      %p157 = scmp.lt.s32.totalorder %s16, 2
      // Predicated region
      $region21: #{tpu_custom_call.1} parent=5 // pred_check
        %p158 = pneg %p157
      $region22: #{tpu_custom_call.1} parent=5 // pred_check_branch
        %160 = sbr.rel (%p158) target = $region24
      $region23: #{tpu_custom_call.1} parent=5 // pred_region
        // Predicated region
        $region25: #{tpu_custom_call.1} parent=23 // pred_check
          %p161 = pneg %p50
        $region26: #{tpu_custom_call.1} parent=23 // pred_check_branch
          %163 = sbr.rel (%p161) target = $region28
        $region27: #{tpu_custom_call.1} parent=23 // pred_region
          %s164 = sand.u32 %s40, 1
          %s165 = scalar_lea.sflag [#allocation3], %s164
          %s166 = sand.u32 %s40, 1
          %s167 = smul.addr %s166, 8
          %s168 = scalar_lea.vmem [#allocation2], %s167
          %s170 = ssub.s32 128, 128
          %171 = vsyncadd %s165, %s170
          %s172 = sadd.s32 %s24, %s23
          %s173 = smul.addr %s172, 128
          %s174 = scalar_lea.hbm %s0, %s173
          %s176 = sshll.u32 %s168, 4
          %s177 = int_to_ptr.vmem [resolvable:$true] %s176
          %179 = dma.hbm_to_vmem [thread:$0]  %s174, 128, %s177, %s165
        $region28: #{tpu_custom_call.1} parent=23 // pred_fallthru
          _
      $region24: #{tpu_custom_call.1} parent=5 // pred_fallthru
        _
      %p180 = scmp.le.s32.totalorder 1, %s16
      %p181 = scmp.lt.s32.totalorder %s16, 3
      %p182 = pnand %p180, %p181
      %p183 = pneg %p182
      // Predicated region
      $region29: #{tpu_custom_call.1} parent=5 // pred_check
        _
      $region30: #{tpu_custom_call.1} parent=5 // pred_check_branch
        %185 = sbr.rel (%p182) target = $region32
      $region31: #{tpu_custom_call.1} parent=5 // pred_region
        %s186 = ssub.s32 %s16, 1
        %s187 = sand.u32 %s43, 1
        %s188 = scalar_lea.sflag [#allocation3], %s187
        %s189 = sand.u32 %s43, 1
        %s190 = smul.addr %s189, 8
        %s191 = scalar_lea.vmem [#allocation2], %s190
        // Predicated region
        $region33: #{tpu_custom_call.1} parent=31 // pred_check
          %p192 = pneg %p56
        $region34: #{tpu_custom_call.1} parent=31 // pred_check_branch
          %194 = sbr.rel (%p192) target = $region36
        $region35: #{tpu_custom_call.1} parent=31 // pred_region
          %195 = dma.done %s188, 128
        $region36: #{tpu_custom_call.1} parent=31 // pred_fallthru
          _
        // Predicated region
        $region37: #{tpu_custom_call.1} parent=31 // pred_check
          %p196 = pneg %p77
        $region38: #{tpu_custom_call.1} parent=31 // pred_check_branch
          %198 = sbr.rel (%p196) target = $region40
        $region39: #{tpu_custom_call.1} parent=31 // pred_region
          %199 = dma.done [#allocation6], 256
        $region40: #{tpu_custom_call.1} parent=31 // pred_fallthru
          _
        %s200 = sand.u32 %s43, 1
        %s201 = scalar_lea.sflag [#allocation3], %s200
        %s202 = sand.u32 %s43, 1
        %s203 = smul.addr %s202, 8
        %s204 = scalar_lea.vmem [#allocation2], %s203
        %p205 = pneg %p56
        %p206 = pneg %p53
        %p207 = pneg %p77
        %p208 = pneg %p74
        %p209 = pneg %p98
        %p210 = pneg %p95
        %p211 = pneg %p126
        %p212 = pneg %p123
        %s213 = sand.u32 %s113, 1
        %s214 = scalar_lea.sflag [#allocation4], %s213
        %s215 = sand.u32 %s113, 1
        %s216 = smul.addr %s215, 8
        %s217 = scalar_lea.vmem [#allocation7], %s216
        %v219 = vld [vmem:[%s191] sm:$0xff]
        %v220 = vpack.c.bf16 %v219, %v219
        %v221 = vld [vmem:[#allocation5] sm:$0xf]
        %v222 = vld [vmem:[#allocation5 + $0x4] sm:$0xf]
        %v223 = vld [vmem:[#allocation5 + $0x8] sm:$0xf]
        %v224 = vld [vmem:[#allocation5 + $0xc] sm:$0xf]
        %v225 = vld [vmem:[%s2] sm:$0x1]
        %v227 = vlaneseq
        %v228 = vshrl.u32 %v227, 7
        %v229 = vsub.s32 0, %v228
        %v230 = vrot.slane %v225, %v229
        %v236 = vunpack.c.l.b16 %v221
        %v237 = vunpack.c.l.b16 %v222
        %v238 = vunpack.c.l.b16 %v223
        %v239 = vunpack.c.l.b16 %v224
        %v240 = vpack.c.b16 %v237, %v236
        %v241 = vpack.c.b16 %v239, %v238
        %vm244 = vcmask 261120
        %v246 = vsel %vm244, %v220, 0
        %248 = vmatprep.subr.bf16.mxu0 0
        %249 = vmatpush1.bf16.msra.mxu0 %v240
        %250 = vmatprep.subr.bf16.mxu0 0
        %251 = vmatpush1.bf16.msra.mxu0 %v241
        %252 = vmatprep.subr.bf16.mxu0 0
        %253 = vmatpush1.bf16.msra.mxu0 0
        %254 = vmatprep.subr.bf16.mxu0 0
        %255 = vmatpush1.bf16.msra.mxu0 0
        %256 = vmatprep.subr.bf16.mxu0 0
        %257 = vmatpush1.bf16.msra.mxu0 0
        %258 = vmatprep.subr.bf16.mxu0 0
        %259 = vmatpush1.bf16.msra.mxu0 0
        %260 = vmatprep.subr.bf16.mxu0 0
        %261 = vmatpush1.bf16.msra.mxu0 0
        %262 = vmatprep.subr.bf16.mxu0 0
        %263 = vmatpush1.bf16.msra.mxu0 0
        %264 = vmatprep.subr.bf16.mxu0 0
        %265 = vmatpush1.bf16.msra.mxu0 0
        %266 = vmatprep.subr.bf16.mxu0 0
        %267 = vmatpush1.bf16.msra.mxu0 0
        %268 = vmatprep.subr.bf16.mxu0 0
        %269 = vmatpush1.bf16.msra.mxu0 0
        %270 = vmatprep.subr.bf16.mxu0 0
        %271 = vmatpush1.bf16.msra.mxu0 0
        %272 = vmatprep.subr.bf16.mxu0 0
        %273 = vmatpush1.bf16.msra.mxu0 0
        %274 = vmatprep.subr.bf16.mxu0 0
        %275 = vmatpush1.bf16.msra.mxu0 0
        %276 = vmatprep.subr.bf16.mxu0 0
        %277 = vmatpush1.bf16.msra.mxu0 0
        %278 = vmatprep.subr.bf16.mxu0 0
        %279 = vmatpush1.bf16.msra.mxu0 0
        %280 = vmatprep.mubr.bf16.mxu0 0
        %281 = vmatmul.mubr.bf16.gmra.mrb[0].mxu0 %v246
        %v282 = vpop.f32.mrb[0].mxu0
        %v283 = vadd.f32 %v230, %v282
        %v284 = vpop.f32.mrb[0].mxu0
        %v285 = vpop.f32.mrb[0].mxu0
        %v286 = vpop.f32.mrb[0].mxu0
        %287 = vdwg.mxu0
        %288 = vst.msk [vmem:[%s217] sm:$0xff] %vm244, %v283
        %s289 = sand.u32 %s113, 1
        %s290 = scalar_lea.sflag [#allocation4], %s289
        %s291 = sand.u32 %s113, 1
        %s292 = smul.addr %s291, 8
        %s293 = scalar_lea.vmem [#allocation7], %s292
        // Predicated region
        $region41: #{tpu_custom_call.1} parent=31 // pred_check
          %p294 = pneg %p123
        $region42: #{tpu_custom_call.1} parent=31 // pred_check_branch
          %296 = sbr.rel (%p294) target = $region44
        $region43: #{tpu_custom_call.1} parent=31 // pred_region
          %s298 = ssub.s32 128, 128
          %299 = vsyncadd %s290, %s298
          %s300 = sadd.s32 %s26, %s25
          %s301 = smul.addr %s300, 128
          %s302 = scalar_lea.hbm %s3, %s301
          %s304 = sshll.u32 %s293, 4
          %s305 = int_to_ptr.vmem [resolvable:$true] %s304
          %307 = dma.vmem_to_hbm [thread:$0]  %s305, 128, %s302, %s290
        $region44: #{tpu_custom_call.1} parent=31 // pred_fallthru
          _
      $region32: #{tpu_custom_call.1} parent=5 // pred_fallthru
        _
      %p308 = scmp.le.s32.totalorder 2, %s16
      // Predicated region
      $region45: #{tpu_custom_call.1} parent=5 // pred_check
        %p309 = pneg %p308
      $region46: #{tpu_custom_call.1} parent=5 // pred_check_branch
        %311 = sbr.rel (%p309) target = $region48
      $region47: #{tpu_custom_call.1} parent=5 // pred_region
        %s312 = ssub.s32 %s16, 2
        // Predicated region
        $region49: #{tpu_custom_call.1} parent=47 // pred_check
          %p313 = pneg %p129
        $region50: #{tpu_custom_call.1} parent=47 // pred_check_branch
          %315 = sbr.rel (%p313) target = $region52
        $region51: #{tpu_custom_call.1} parent=47 // pred_region
          %s316 = sand.u32 %s114, 1
          %s317 = scalar_lea.sflag [#allocation4], %s316
          %s318 = sand.u32 %s114, 1
          %s319 = smul.addr %s318, 8
          %s320 = scalar_lea.vmem [#allocation7], %s319
          %321 = dma.done %s317, 128
        $region52: #{tpu_custom_call.1} parent=47 // pred_fallthru
          _
      $region48: #{tpu_custom_call.1} parent=5 // pred_fallthru
        _
    $region6: #{tpu_custom_call.1} parent=1 // loop_footer
      %s20 = sadd.s32 1, %s16
    $region7: #{tpu_custom_call.1} parent=1 // loop_footer_branch
      %15 = sbr.rel target = $region3
    $region8: #{tpu_custom_call.1} parent=1 // loop_exit
      _
    %322 = vsyncpa [#allocation3], 1
    %s323 = scalar_lea.sflag [#allocation3], 1
    %324 = vsyncpa %s323, 1
    %325 = vsyncpa [#allocation6], 1
    %326 = vsyncpa [#allocation4], 1
    %s327 = scalar_lea.sflag [#allocation4], 1
    %328 = vsyncpa %s327, 1

</llo_original>
